<compile_context>
chip_gen: v5e
topology: v5e:2x2
jax: 0.10.0
libtpu: 0.0.40
codegen_flags: <defaults>
</compile_context>

<pallas_src>
import jax
import jax.numpy as jnp
from jax.experimental import pallas as pl
from jax.experimental.pallas import tpu as pltpu


_TARGET_TILE_BYTES = 4 * 1024 * 1024   # ~4 MiB x-tile; in+out double-buffered ~16 MiB
_VMEM_LIMIT_BYTES = 32 * 1024 * 1024   # covers the footprint even on v5e's 16 MiB default


def _droppath_kernel(x_ref, s_ref, o_ref):
    # x_ref: (Bs, Tf) in x.dtype; s_ref: (Bs, 1) per-sample scale in x.dtype.
    # Native-dtype multiply, broadcast along lanes.
    o_ref[...] = x_ref[...] * s_ref[...]


def _per_sample_scale(seed, batch, keep_prob):
    """Per-sample scale: 0.0 (dropped) or 1/keep_prob (kept), f32, shape (batch,)."""
    key = jax.random.PRNGKey(seed)
    u = jax.random.uniform(key, (batch,), dtype=jnp.float32)
    return jnp.floor(jnp.float32(keep_prob) + u) / jnp.float32(keep_prob)


def _pick_tiles(batch, feat, elem_bytes):
    """Pick (Bs, Tf) block shape: lane-dense, ~4 MiB, dtype-aware sublane quantum."""
    target_elems = max(1, _TARGET_TILE_BYTES // elem_bytes)
    sublane_q = max(8, 8 * (4 // elem_bytes))   # 8 f32, 16 bf16, 32 int8/fp8

    # Feature (lane-major) axis: tile in multiples of 128, else full-extent block.
    if feat % 128 == 0:
        rows_hint = min(batch, sublane_q)
        tf = (target_elems // max(1, rows_hint)) // 128 * 128
        tf = max(128, min(feat, tf))
    else:
        # Full-extent block is the only legal non-128-multiple choice.
        # TODO(synk): very large feature slabs that are not a multiple of 128 are not
        # re-tiled here and may exceed the VMEM budget.
        tf = feat

    # Batch (sublane-major) axis: full extent, or a multiple of the packing quantum.
    rows = max(1, target_elems // tf)
    if rows >= batch or batch <= sublane_q:
        bs = batch                                   # full extent (always legal)
    else:
        bs = max(sublane_q, (rows // sublane_q) * sublane_q)
    return bs, tf


def drop_path(x, drop_prob, seed, *, training=True):
    """DropPath forward. x: (B, ...). Returns same shape/dtype."""
    if drop_prob == 0.0 or not training:
        return x
    if drop_prob >= 1.0:
        # keep_prob == 0 would divide by zero; everything is dropped.
        return jnp.zeros_like(x)

    keep_prob = 1.0 - drop_prob
    B = x.shape[0]
    feat = 1
    for d in x.shape[1:]:
        feat *= d

    elem_bytes = jnp.dtype(x.dtype).itemsize
    Bs, Tf = _pick_tiles(B, feat, elem_bytes)

    scale = _per_sample_scale(seed, B, keep_prob).astype(x.dtype).reshape(B, 1)
    x_flat = x.reshape(B, feat)

    grid = (pl.cdiv(B, Bs), pl.cdiv(feat, Tf))
    out_flat = pl.pallas_call(
        _droppath_kernel,
        out_shape=jax.ShapeDtypeStruct((B, feat), x.dtype),
        grid=grid,
        in_specs=[
            pl.BlockSpec((Bs, Tf), lambda bi, ti: (bi, ti)),
            pl.BlockSpec((Bs, 1), lambda bi, ti: (bi, 0)),
        ],
        out_specs=pl.BlockSpec((Bs, Tf), lambda bi, ti: (bi, ti)),
        compiler_params=pltpu.CompilerParams(
            dimension_semantics=("parallel", "parallel"),
            vmem_limit_bytes=_VMEM_LIMIT_BYTES,
        ),
    )(x_flat, scale)

    return out_flat.reshape(x.shape)


if __name__ == "__main__":
    key = jax.random.PRNGKey(0)
    B, C, H, W = 2, 4, 16, 16
    x = jax.random.normal(key, (B, C, H, W), dtype=jnp.float32)

    drop_prob, seed = 0.25, 42
    keep_prob = 1.0 - drop_prob

    out = jax.block_until_ready(drop_path(x, drop_prob, seed, training=True))
    assert out.shape == x.shape and out.dtype == x.dtype

    # Exact reference built from the same per-sample scale draw.
    scale = _per_sample_scale(seed, B, keep_prob).astype(x.dtype)
    ref = x * scale.reshape(B, 1, 1, 1)
    assert bool(jnp.allclose(out, ref, rtol=1e-6, atol=1e-6)), "mismatch vs reference"

    # Each sample must be either all-zero or x / keep_prob elementwise.
    for b in range(B):
        o_b = out[b]
        zero = bool(jnp.allclose(o_b, 0.0))
        kept = bool(jnp.allclose(o_b, x[b] / keep_prob, rtol=1e-5, atol=1e-5))
        assert zero or kept, "DropPath output is not a valid per-sample keep/drop"

    # bf16 path (native-dtype multiply, packed sublanes, multi-sample blocks).
    xb = jax.random.normal(jax.random.PRNGKey(1), (32, 8, 4, 32), dtype=jnp.bfloat16)
    outb = jax.block_until_ready(drop_path(xb, 0.5, 7, training=True))
    scale_b = _per_sample_scale(7, 32, 0.5).astype(jnp.bfloat16)
    refb = xb * scale_b.reshape(32, 1, 1, 1)
    assert bool(
        jnp.allclose(outb.astype(jnp.float32), refb.astype(jnp.float32),
                     rtol=2e-2, atol=1e-2)
    ), "bf16 path mismatch"

    # Eval mode / drop_prob == 0 -> identity; drop_prob == 1 -> zeros (guarded).
    assert bool(jnp.allclose(drop_path(x, drop_prob, 0, training=False), x))
    assert bool(jnp.allclose(drop_path(x, 0.0, 0, training=True), x))
    assert bool(jnp.allclose(drop_path(x, 1.0, 0, training=True), 0.0))

    print("KERNEL_OK")
</pallas_src>

<mosaic_0001>
module attributes {stable_mosaic.version = 11 : i64} {
  func.func @_droppath_kernel(%arg0: i32, %arg1: i32, %arg2: memref<2x1024xf32, #tpu.memory_space<vmem>>, %arg3: memref<2x1xf32, #tpu.memory_space<vmem>>, %arg4: memref<2x1024xf32, #tpu.memory_space<vmem>>) attributes {dimension_semantics = [#tpu.dimension_semantics<parallel>, #tpu.dimension_semantics<parallel>], iteration_bounds = array<i64: 1, 1>, scalar_prefetch = 0 : i64, scratch_operands = 0 : i64, tpu.core_type = #tpu.core_type<tc>, window_params = [{transform_indices = @transform_0, window_bounds = array<i64: 2, 1024>}, {transform_indices = @transform_1, window_bounds = array<i64: 2, 1>}, {transform_indices = @transform_2, window_bounds = array<i64: 2, 1024>}]} {
    %c0 = arith.constant 0 : index
    %c0_0 = arith.constant 0 : index
    %0 = vector.load %arg2[%c0, %c0_0] : memref<2x1024xf32, #tpu.memory_space<vmem>>, vector<2x1024xf32>
    %c0_1 = arith.constant 0 : index
    %c0_2 = arith.constant 0 : index
    %1 = vector.load %arg3[%c0_1, %c0_2] : memref<2x1xf32, #tpu.memory_space<vmem>>, vector<2x1xf32>
    %2 = vector.broadcast %1 : vector<2x1xf32> to vector<2x1024xf32>
    %3 = arith.mulf %0, %2 : vector<2x1024xf32>
    %c0_3 = arith.constant 0 : index
    %c0_4 = arith.constant 0 : index
    %4 = vector.load %arg4[%c0_3, %c0_4] : memref<2x1024xf32, #tpu.memory_space<vmem>>, vector<2x1024xf32>
    tpu.vector_store %arg4[%c0_3, %c0_4], %3 {strides = array<i32>} : memref<2x1024xf32, #tpu.memory_space<vmem>>, vector<2x1024xf32>,
    return
  }
  func.func @transform_0(%arg0: i32, %arg1: i32) -> (i32, i32) {
    %c0_i32 = arith.constant 0 : i32
    return %arg0, %arg1 : i32, i32
  }
  func.func @transform_1(%arg0: i32, %arg1: i32) -> (i32, i32) {
    %c0_i32 = arith.constant 0 : i32
    %c0_i32_0 = arith.constant 0 : i32
    return %arg0, %c0_i32 : i32, i32
  }
  func.func @transform_2(%arg0: i32, %arg1: i32) -> (i32, i32) {
    %c0_i32 = arith.constant 0 : i32
    return %arg0, %arg1 : i32, i32
  }
}

</mosaic_0001>

<llo_original>
// kernel: tpu_custom_call.1
$region0: #{tpu_custom_call.1}
  #allocation0 [shape = 'u32[]', space=smem, size = 0x4, offset = 0x4, fixed_abs, tag = 'smem constant byte address 0x4 - core index']
  #allocation1 [shape = 'u32[72,128]{1,0:T(1,128)}', space=vmem, size = 0x9000, scoped, tag = 'internal scratch']
  %s0 = inlined_call_operand.hbm [shape: f32[2,1024], index: 0, kind: input, shape index: {}]
  %s1 = inlined_call_operand.vmem [shape: f32[2,1], index: 1, kind: input, shape index: {}]
  %s2 = inlined_call_operand.hbm [shape: f32[2,1024], index: 2, kind: output, shape index: {}]
  %s3 = sld [smem:[#allocation0]]
  $region22: #{tpu_custom_call.1} parent=0
    _
  %s5 = ssub.s32 1, %s3
  %s6 = scalar_select 0, %s5, %s3
  $region1: #{tpu_custom_call.1} parent=0
    #allocation2 [shape = 'u8[8192]{0}', space=vmem, size = 0x2000, scoped, tag = 'input window, operand 0, single buffered']
    #allocation3 [shape = 's32[1]{0}', space=sflag, size = 0x4, scoped, tag = 'scoped memory for tpu_custom_call.1']
    #allocation4 [shape = 's32[1]{0}', space=sflag, size = 0x4, scoped, tag = 'scoped memory for tpu_custom_call.1']
    #allocation5 [shape = 'u8[8192]{0}', space=vmem, size = 0x2000, scoped, tag = 'output window, operand 0, single buffered']
    %7 = vsyncpa [#allocation3], 0
    %8 = vsyncpa [#allocation4], 0
    // Predicated region
    $region2: #{tpu_custom_call.1} parent=1 // pred_check
      _
    $region3: #{tpu_custom_call.1} parent=1 // pred_check_branch
      %10 = sbr.rel (0) target = $region5
    $region4: #{tpu_custom_call.1} parent=1 // pred_region
      %12 = vsyncadd [#allocation3], 0
      %s14 = sshll.u32 %s0, 4
      %s15 = int_to_ptr.hbm [resolvable:$true] %s14
      %s16 = sshll.u32 [#allocation2], 4
      %s17 = int_to_ptr.vmem [resolvable:$true] %s16
      %19 = dma.hbm_to_vmem [thread:$0]  %s15, 256, %s17, [#allocation3]
    $region5: #{tpu_custom_call.1} parent=1 // pred_fallthru
      _
    // Predicated region
    $region6: #{tpu_custom_call.1} parent=1 // pred_check
      _
    $region7: #{tpu_custom_call.1} parent=1 // pred_check_branch
      %21 = sbr.rel (0) target = $region9
    $region8: #{tpu_custom_call.1} parent=1 // pred_region
      _
    $region9: #{tpu_custom_call.1} parent=1 // pred_fallthru
      _
    // Predicated region
    $region10: #{tpu_custom_call.1} parent=1 // pred_check
      _
    $region11: #{tpu_custom_call.1} parent=1 // pred_check_branch
      %23 = sbr.rel (0) target = $region13
    $region12: #{tpu_custom_call.1} parent=1 // pred_region
      %25 = dma.done [#allocation3], 256
    $region13: #{tpu_custom_call.1} parent=1 // pred_fallthru
      _
    %v26 = vld [vmem:[#allocation2] sm:$0xff]
    %v27 = vld [vmem:[#allocation2 + $0x8] sm:$0xff]
    %v28 = vld [vmem:[%s1] sm:$0x3]
    %30 = vset.pattern.permute.xlu0 0
    %31 = vperm.xlu0 %30, %v28
    %v32 = vpop.permute.xlu0 %31
    %v34 = vunpack.c.l.s4 269488144
    %v35 = vunpack.c.0.s8 %v34
    %v36 = vperm.slane %v32, %v35
    %v38 = vmul.f32 %v26, %v36
    %v39 = vmul.f32 %v27, %v36
    %40 = vst [vmem:[#allocation5] sm:$0xff] %v38
    %41 = vst [vmem:[#allocation5 + $0x8] sm:$0xff] %v39
    // Predicated region
    $region14: #{tpu_custom_call.1} parent=1 // pred_check
      _
    $region15: #{tpu_custom_call.1} parent=1 // pred_check_branch
      %43 = sbr.rel (0) target = $region17
    $region16: #{tpu_custom_call.1} parent=1 // pred_region
      %45 = vsyncadd [#allocation4], 0
      %s47 = sshll.u32 [#allocation5], 4
      %s48 = int_to_ptr.vmem [resolvable:$true] %s47
      %s49 = sshll.u32 %s2, 4
      %s50 = int_to_ptr.hbm [resolvable:$true] %s49
      %52 = dma.vmem_to_hbm [thread:$0]  %s48, 256, %s50, [#allocation4]
    $region17: #{tpu_custom_call.1} parent=1 // pred_fallthru
      _
    // Predicated region
    $region18: #{tpu_custom_call.1} parent=1 // pred_check
      _
    $region19: #{tpu_custom_call.1} parent=1 // pred_check_branch
      %54 = sbr.rel (0) target = $region21
    $region20: #{tpu_custom_call.1} parent=1 // pred_region
      %56 = dma.done [#allocation4], 256
    $region21: #{tpu_custom_call.1} parent=1 // pred_fallthru
      _
    %57 = vsyncpa [#allocation3], 1
    %58 = vsyncpa [#allocation4], 1

</llo_original>
